<compile_context>
chip_gen: v7x
topology: tpu7x:2x2x1
jax: 0.10.0
libtpu: 0.0.40
codegen_flags: <defaults>
</compile_context>

<pallas_src>
import jax
import jax.numpy as jnp
from jax import lax
from jax.experimental import pallas as pl
from jax.experimental.pallas import tpu as pltpu

# SSD defaults: dboxes.scale_xy = 0.1, dboxes.scale_wh = 0.2
SCALE_XY = 1.0 / 0.1   # = 10.0
SCALE_WH = 1.0 / 0.2   # = 5.0


def _row_to_col(row):
    """(1, A) -> (A, 1) via an (8, A) -> (A, 8) transpose so the XLU transpose
    operates on well-formed 8x128 tiles."""
    a = row.shape[-1]
    return jnp.transpose(jnp.broadcast_to(row, (8, a)))[:, 0:1]


def _smooth_l1(d):
    ad = jnp.abs(d)
    return jnp.where(ad < 1.0, 0.5 * d * d, ad - 0.5)


def _ssd_loss_kernel(ploc_ref, plabel_ref, gloc_ref, glabel_ref, dconst_ref,
                     out_ref, cneg_ref):
    ploc = ploc_ref[0]           # (4, A) f32
    plabel = plabel_ref[0]       # (C, A) f32
    gloc = gloc_ref[0]           # (4, A) f32
    glabel = glabel_ref[0]       # (1, A) int32
    dxy = dconst_ref[0:2, :]     # (2, A)
    inv_dwh = dconst_ref[2:4, :]
    log_dwh = dconst_ref[4:6, :]

    C, A = plabel.shape

    mask = glabel > 0                                              # (1, A)
    maskf = mask.astype(jnp.float32)
    pos_num = jnp.sum(maskf, axis=1, keepdims=True)                # (1, 1)

    # ---- _location_vec(gloc) with precomputed dbox constants ----------------
    gxy = SCALE_XY * (gloc[0:2, :] - dxy) * inv_dwh                # (2, A)
    gwh = SCALE_WH * (jnp.log(gloc[2:4, :]) - log_dwh)             # (2, A)

    # ---- SmoothL1 (beta=1, reduction='none'), summed over the 4 coords ------
    loc_per_anchor = (
        jnp.sum(_smooth_l1(ploc[0:2, :] - gxy), axis=0, keepdims=True)
        + jnp.sum(_smooth_l1(ploc[2:4, :] - gwh), axis=0, keepdims=True))   # (1, A)
    loc_loss = jnp.sum(maskf * loc_per_anchor, axis=1, keepdims=True)       # (1, 1)

    # ---- CrossEntropy over the class axis (axis 0), reduction='none' --------
    m = jnp.max(plabel, axis=0, keepdims=True)                              # (1, A)
    lse = m + jnp.log(jnp.sum(jnp.exp(plabel - m), axis=0, keepdims=True))  # (1, A)
    cls_iota = lax.broadcasted_iota(jnp.int32, (C, 1), 0)                   # (C, 1)
    picked = jnp.sum(jnp.where(cls_iota == glabel, plabel, 0.0),
                     axis=0, keepdims=True)                                 # (1, A)
    con = lse - picked                                                      # (1, A)

    # ---- Hard negative mining: exact stable-descending-sort rank by counting,
    # tiled over the j (compared-against) axis instead of an (A, A) matrix.
    #   rank[i] = #{j : v[j] > v[i]} + #{j < i : v[j] == v[i]}
    con_neg = jnp.where(mask, 0.0, con)                            # (1, A)
    cneg_ref[...] = con_neg                                        # stash for j-slicing
    vi_col = _row_to_col(con_neg)                                  # (A, 1)
    i_col = lax.broadcasted_iota(jnp.int32, (A, 1), 0)             # (A, 1)

    TJ = A if A <= 512 else 512                                    # lane-tile of j
    n_j = A // TJ

    def jblock(jb, acc):
        j0 = pl.multiple_of(jb * TJ, TJ)
        vj = cneg_ref[:, pl.ds(j0, TJ)]                            # (1, TJ)
        jidx = j0 + lax.broadcasted_iota(jnp.int32, (1, TJ), 1)    # (1, TJ)
        keep = (vj > vi_col) | ((vj == vi_col) & (jidx < i_col))   # (A, TJ) fused
        return acc + jnp.sum(jnp.where(keep, 1.0, 0.0), axis=1, keepdims=True)

    rank_col = lax.fori_loop(0, n_j, jblock,
                             jnp.zeros((A, 1), jnp.float32))       # (A, 1)

    neg_num = jnp.minimum(3.0 * pos_num, float(A))                 # (1, 1)
    negf_col = (rank_col < neg_num).astype(jnp.float32)            # (A, 1)
    con_col = _row_to_col(con)                                     # (A, 1)

    con_loss = (jnp.sum(con * maskf, axis=1, keepdims=True)
                + jnp.sum(con_col * negf_col, axis=0, keepdims=True))       # (1, 1)

    # ---- Combine -------------------------------------------------------------
    total = loc_loss + con_loss
    num_mask = (pos_num > 0.0).astype(jnp.float32)
    pos_c = jnp.maximum(pos_num, 1e-6)
    out_ref[0] = total * num_mask / pos_c                          # (1, 1) per sample


def ssd_loss(ploc, plabel, gloc, glabel, dboxes):
    N, _, A = ploc.shape
    C = plabel.shape[1]
    TJ = A if A <= 512 else 512
    assert A % TJ == 0, "anchor axis must be a multiple of the j-tile"
    # TODO(synk): real SSD uses A=8732; pad the anchor axis to a 128-multiple
    # (padded anchors: glabel=0, gloc=dbox) in preprocessing before calling.

    dxy = dboxes[0, :2, :].astype(jnp.float32)                     # (2, A)
    dwh = dboxes[0, 2:, :].astype(jnp.float32)                     # (2, A)
    dconst = jnp.concatenate([dxy, 1.0 / dwh, jnp.log(dwh)], axis=0)   # (6, A)
    glabel3 = glabel.astype(jnp.int32)[:, None, :]                 # (N, 1, A)

    per_sample = pl.pallas_call(
        _ssd_loss_kernel,
        out_shape=jax.ShapeDtypeStruct((N, 1, 1), jnp.float32),
        grid_spec=pltpu.PrefetchScalarGridSpec(
            num_scalar_prefetch=0,
            grid=(N,),
            in_specs=[
                pl.BlockSpec((1, 4, A), lambda i: (i, 0, 0)),      # ploc
                pl.BlockSpec((1, C, A), lambda i: (i, 0, 0)),      # plabel
                pl.BlockSpec((1, 4, A), lambda i: (i, 0, 0)),      # gloc
                pl.BlockSpec((1, 1, A), lambda i: (i, 0, 0)),      # glabel
                pl.BlockSpec((6, A), lambda i: (0, 0)),            # dbox constants (replicated)
            ],
            out_specs=pl.BlockSpec((1, 1, 1), lambda i: (i, 0, 0)),
            scratch_shapes=[pltpu.VMEM((1, A), jnp.float32)],      # con_neg row
        ),
        compiler_params=pltpu.CompilerParams(
            dimension_semantics=("parallel",)),
    )(ploc.astype(jnp.float32), plabel.astype(jnp.float32),
      gloc.astype(jnp.float32), glabel3, dconst)

    return jnp.mean(per_sample[:, 0, 0])


def ssd_loss_ref(ploc, plabel, gloc, glabel, dboxes):
    """Pure-JAX mirror of the PyTorch forward, for verification."""
    mask = glabel > 0
    pos_num = jnp.sum(mask, axis=1)
    dxy, dwh = dboxes[:, :2, :], dboxes[:, 2:, :]
    gxy = SCALE_XY * (gloc[:, :2, :] - dxy) / dwh
    gwh = SCALE_WH * jnp.log(gloc[:, 2:, :] / dwh)
    vec_gd = jnp.concatenate([gxy, gwh], axis=1)
    d = ploc - vec_gd
    sl1 = jnp.where(jnp.abs(d) < 1.0, 0.5 * d * d, jnp.abs(d) - 0.5)
    loc_loss = jnp.sum(mask.astype(jnp.float32) * jnp.sum(sl1, axis=1), axis=1)
    con = jax.nn.logsumexp(plabel, axis=1) - jnp.take_along_axis(
        plabel, glabel[:, None, :], axis=1)[:, 0, :]
    con_neg = jnp.where(mask, 0.0, con)
    con_idx = jnp.argsort(-con_neg, axis=1)          # stable descending
    con_rank = jnp.argsort(con_idx, axis=1)
    neg_num = jnp.minimum(3 * pos_num, mask.shape[1])[:, None]
    neg_mask = con_rank < neg_num
    con_loss = jnp.sum(
        con * (mask.astype(jnp.float32) + neg_mask.astype(jnp.float32)), axis=1)
    total = loc_loss + con_loss
    num_mask = (pos_num > 0).astype(jnp.float32)
    pos_c = jnp.maximum(pos_num.astype(jnp.float32), 1e-6)
    return jnp.mean(total * num_mask / pos_c)


if __name__ == "__main__":
    N, C, A = 2, 8, 128  # batch, num classes, num anchors (8732 in real SSD)
    key = jax.random.PRNGKey(0)
    k1, k2, k3, k4, k5, k6 = jax.random.split(key, 6)

    ploc = 0.1 * jax.random.normal(k1, (N, 4, A), jnp.float32)
    plabel = jax.random.normal(k2, (N, C, A), jnp.float32)
    gxy = jax.random.uniform(k3, (N, 2, A), jnp.float32, 0.05, 0.95)
    gwh = jax.random.uniform(k4, (N, 2, A), jnp.float32, 0.05, 0.50)
    gloc = jnp.concatenate([gxy, gwh], axis=1)
    labels = jax.random.randint(k5, (N, A), 0, C)
    keep = jax.random.bernoulli(k6, 0.3, (N, A))
    glabel = jnp.where(keep, labels, 0).astype(jnp.int32)

    # deterministic default boxes (cx, cy, w, h) in (0, 1), shape (1, 4, A)
    idx = jnp.arange(A, dtype=jnp.float32)
    cx = ((idx % 16.0) + 0.5) / 16.0
    cy = (jnp.floor(idx / 16.0) + 0.5) / 8.0
    w = 0.1 + 0.02 * (idx % 4.0)
    h = 0.1 + 0.03 * (idx % 3.0)
    dboxes = jnp.stack([cx, cy, w, h], axis=0)[None]   # (1, 4, A)

    out = jax.jit(ssd_loss)(ploc, plabel, gloc, glabel, dboxes)
    jax.block_until_ready(out)

    ref = ssd_loss_ref(ploc, plabel, gloc, glabel, dboxes)
    assert jnp.allclose(out, ref, rtol=1e-4, atol=1e-4), (out, ref)
    print("KERNEL_OK")
</pallas_src>

<mosaic_0001>
module attributes {stable_mosaic.version = 11 : i64} {
  func.func @_ssd_loss_kernel(%arg0: i32, %arg1: memref<1x4x128xf32, #tpu.memory_space<vmem>>, %arg2: memref<1x8x128xf32, #tpu.memory_space<vmem>>, %arg3: memref<1x4x128xf32, #tpu.memory_space<vmem>>, %arg4: memref<1x1x128xi32, #tpu.memory_space<vmem>>, %arg5: memref<6x128xf32, #tpu.memory_space<vmem>>, %arg6: memref<1x1x1xf32, #tpu.memory_space<vmem>>, %arg7: memref<1x128xf32, #tpu.memory_space<vmem>>) attributes {dimension_semantics = [#tpu.dimension_semantics<parallel>], iteration_bounds = array<i64: 2>, scalar_prefetch = 0 : i64, scratch_operands = 1 : i64, tpu.core_type = #tpu.core_type<tc>, window_params = [{transform_indices = @transform_0, window_bounds = array<i64: 1, 4, 128>}, {transform_indices = @transform_1, window_bounds = array<i64: 1, 8, 128>}, {transform_indices = @transform_2, window_bounds = array<i64: 1, 4, 128>}, {transform_indices = @transform_3, window_bounds = array<i64: 1, 1, 128>}, {pipeline_mode = #tpu.pipeline_mode<synchronous>, transform_indices = @transform_4, window_bounds = array<i64: 6, 128>}, {transform_indices = @transform_5, window_bounds = array<i64: 1, 1, 1>}]} {
    %c0 = arith.constant 0 : index
    %c0_0 = arith.constant 0 : index
    %c0_1 = arith.constant 0 : index
    %0 = vector.load %arg1[%c0, %c0_0, %c0_1] : memref<1x4x128xf32, #tpu.memory_space<vmem>>, vector<1x4x128xf32>
    %1 = vector.shape_cast %0 : vector<1x4x128xf32> to vector<4x128xf32>
    %c0_2 = arith.constant 0 : index
    %c0_3 = arith.constant 0 : index
    %c0_4 = arith.constant 0 : index
    %2 = vector.load %arg2[%c0_2, %c0_3, %c0_4] : memref<1x8x128xf32, #tpu.memory_space<vmem>>, vector<1x8x128xf32>
    %3 = vector.shape_cast %2 : vector<1x8x128xf32> to vector<8x128xf32>
    %c0_5 = arith.constant 0 : index
    %c0_6 = arith.constant 0 : index
    %c0_7 = arith.constant 0 : index
    %4 = vector.load %arg3[%c0_5, %c0_6, %c0_7] : memref<1x4x128xf32, #tpu.memory_space<vmem>>, vector<1x4x128xf32>
    %5 = vector.shape_cast %4 : vector<1x4x128xf32> to vector<4x128xf32>
    %c0_8 = arith.constant 0 : index
    %c0_9 = arith.constant 0 : index
    %c0_10 = arith.constant 0 : index
    %6 = vector.load %arg4[%c0_8, %c0_9, %c0_10] : memref<1x1x128xi32, #tpu.memory_space<vmem>>, vector<1x1x128xi32>
    %7 = vector.shape_cast %6 : vector<1x1x128xi32> to vector<1x128xi32>
    %c0_11 = arith.constant 0 : index
    %c0_12 = arith.constant 0 : index
    %8 = vector.load %arg5[%c0_11, %c0_12] : memref<6x128xf32, #tpu.memory_space<vmem>>, vector<2x128xf32>
    %c2 = arith.constant 2 : index
    %c0_13 = arith.constant 0 : index
    %9 = vector.load %arg5[%c2, %c0_13] : memref<6x128xf32, #tpu.memory_space<vmem>>, vector<2x128xf32>
    %c4 = arith.constant 4 : index
    %c0_14 = arith.constant 0 : index
    %10 = vector.load %arg5[%c4, %c0_14] : memref<6x128xf32, #tpu.memory_space<vmem>>, vector<2x128xf32>
    %c0_i32 = arith.constant 0 : i32
    %11 = vector.broadcast %c0_i32 : i32 to vector<1x128xi32>
    %12 = arith.cmpi sgt, %7, %11 : vector<1x128xi32>
    %13 = arith.extui %12 : vector<1x128xi1> to vector<1x128xi32>
    %14 = arith.sitofp %13 : vector<1x128xi32> to vector<1x128xf32>
    %cst = arith.constant dense<0.000000e+00> : vector<1xf32>
    %15 = vector.multi_reduction <add>, %14, %cst [1] : vector<1x128xf32> to vector<1xf32>
    %16 = vector.shape_cast %15 : vector<1xf32> to vector<1x1xf32>
    %17 = vector.extract_strided_slice %5 {offsets = [0, 0], sizes = [2, 128], strides = [1, 1]} : vector<4x128xf32> to vector<2x128xf32>
    %18 = arith.subf %17, %8 : vector<2x128xf32>
    %cst_15 = arith.constant 1.000000e+01 : f32
    %19 = vector.broadcast %cst_15 : f32 to vector<2x128xf32>
    %20 = arith.mulf %19, %18 : vector<2x128xf32>
    %21 = arith.mulf %20, %9 : vector<2x128xf32>
    %22 = vector.extract_strided_slice %5 {offsets = [2, 0], sizes = [2, 128], strides = [1, 1]} : vector<4x128xf32> to vector<2x128xf32>
    %23 = math.log %22 : vector<2x128xf32>
    %24 = arith.subf %23, %10 : vector<2x128xf32>
    %cst_16 = arith.constant 5.000000e+00 : f32
    %25 = vector.broadcast %cst_16 : f32 to vector<2x128xf32>
    %26 = arith.mulf %25, %24 : vector<2x128xf32>
    %27 = vector.extract_strided_slice %1 {offsets = [0, 0], sizes = [2, 128], strides = [1, 1]} : vector<4x128xf32> to vector<2x128xf32>
    %28 = arith.subf %27, %21 : vector<2x128xf32>
    %29 = math.absf %28 : vector<2x128xf32>
    %cst_17 = arith.constant 1.000000e+00 : f32
    %30 = vector.broadcast %cst_17 : f32 to vector<2x128xf32>
    %31 = arith.cmpf olt, %29, %30 : vector<2x128xf32>
    %cst_18 = arith.constant 5.000000e-01 : f32
    %32 = vector.broadcast %cst_18 : f32 to vector<2x128xf32>
    %33 = arith.mulf %32, %28 : vector<2x128xf32>
    %34 = arith.mulf %33, %28 : vector<2x128xf32>
    %cst_19 = arith.constant 5.000000e-01 : f32
    %35 = vector.broadcast %cst_19 : f32 to vector<2x128xf32>
    %36 = arith.subf %29, %35 : vector<2x128xf32>
    %37 = arith.select %31, %34, %36 : vector<2x128xi1>, vector<2x128xf32>
    %cst_20 = arith.constant dense<0.000000e+00> : vector<128xf32>
    %38 = vector.multi_reduction <add>, %37, %cst_20 [0] : vector<2x128xf32> to vector<128xf32>
    %39 = vector.shape_cast %38 : vector<128xf32> to vector<1x128xf32>
    %40 = vector.extract_strided_slice %1 {offsets = [2, 0], sizes = [2, 128], strides = [1, 1]} : vector<4x128xf32> to vector<2x128xf32>
    %41 = arith.subf %40, %26 : vector<2x128xf32>
    %42 = math.absf %41 : vector<2x128xf32>
    %cst_21 = arith.constant 1.000000e+00 : f32
    %43 = vector.broadcast %cst_21 : f32 to vector<2x128xf32>
    %44 = arith.cmpf olt, %42, %43 : vector<2x128xf32>
    %cst_22 = arith.constant 5.000000e-01 : f32
    %45 = vector.broadcast %cst_22 : f32 to vector<2x128xf32>
    %46 = arith.mulf %45, %41 : vector<2x128xf32>
    %47 = arith.mulf %46, %41 : vector<2x128xf32>
    %cst_23 = arith.constant 5.000000e-01 : f32
    %48 = vector.broadcast %cst_23 : f32 to vector<2x128xf32>
    %49 = arith.subf %42, %48 : vector<2x128xf32>
    %50 = arith.select %44, %47, %49 : vector<2x128xi1>, vector<2x128xf32>
    %cst_24 = arith.constant dense<0.000000e+00> : vector<128xf32>
    %51 = vector.multi_reduction <add>, %50, %cst_24 [0] : vector<2x128xf32> to vector<128xf32>
    %52 = vector.shape_cast %51 : vector<128xf32> to vector<1x128xf32>
    %53 = arith.addf %39, %52 : vector<1x128xf32>
    %54 = arith.mulf %14, %53 : vector<1x128xf32>
    %cst_25 = arith.constant dense<0.000000e+00> : vector<1xf32>
    %55 = vector.multi_reduction <add>, %54, %cst_25 [1] : vector<1x128xf32> to vector<1xf32>
    %56 = vector.shape_cast %55 : vector<1xf32> to vector<1x1xf32>
    %cst_26 = arith.constant dense<0xFF800000> : vector<128xf32>
    %57 = vector.multi_reduction <maximumf>, %3, %cst_26 [0] : vector<8x128xf32> to vector<128xf32>
    %58 = vector.shape_cast %57 : vector<128xf32> to vector<1x128xf32>
    %59 = vector.broadcast %58 : vector<1x128xf32> to vector<8x128xf32>
    %60 = arith.subf %3, %59 : vector<8x128xf32>
    %61 = math.exp %60 : vector<8x128xf32>
    %cst_27 = arith.constant dense<0.000000e+00> : vector<128xf32>
    %62 = vector.multi_reduction <add>, %61, %cst_27 [0] : vector<8x128xf32> to vector<128xf32>
    %63 = vector.shape_cast %62 : vector<128xf32> to vector<1x128xf32>
    %64 = math.log %63 : vector<1x128xf32>
    %65 = arith.addf %58, %64 : vector<1x128xf32>
    %66 = tpu.iota {dimensions = array<i32: 0>} : vector<8x1xi32>
    %67 = vector.broadcast %66 : vector<8x1xi32> to vector<8x128xi32>
    %68 = vector.broadcast %7 : vector<1x128xi32> to vector<8x128xi32>
    %69 = arith.cmpi eq, %67, %68 : vector<8x128xi32>
    %cst_28 = arith.constant 0.000000e+00 : f32
    %70 = vector.broadcast %cst_28 : f32 to vector<8x128xf32>
    %71 = arith.select %69, %3, %70 : vector<8x128xi1>, vector<8x128xf32>
    %cst_29 = arith.constant dense<0.000000e+00> : vector<128xf32>
    %72 = vector.multi_reduction <add>, %71, %cst_29 [0] : vector<8x128xf32> to vector<128xf32>
    %73 = vector.shape_cast %72 : vector<128xf32> to vector<1x128xf32>
    %74 = arith.subf %65, %73 : vector<1x128xf32>
    %cst_30 = arith.constant 0.000000e+00 : f32
    %75 = vector.broadcast %cst_30 : f32 to vector<1x128xf32>
    %76 = arith.select %12, %75, %74 : vector<1x128xi1>, vector<1x128xf32>
    %c0_31 = arith.constant 0 : index
    %c0_32 = arith.constant 0 : index
    %77 = vector.load %arg7[%c0_31, %c0_32] : memref<1x128xf32, #tpu.memory_space<vmem>>, vector<1x128xf32>
    tpu.vector_store %arg7[%c0_31, %c0_32], %76 {strides = array<i32>} : memref<1x128xf32, #tpu.memory_space<vmem>>, vector<1x128xf32>,
    %78 = vector.shape_cast %76 : vector<1x128xf32> to vector<1x128xf32>
    %79 = vector.broadcast %78 : vector<1x128xf32> to vector<8x128xf32>
    %80 = tpu.transpose %79, [1, 0] : vector<8x128xf32> -> vector<128x8xf32>
    %81 = vector.extract_strided_slice %80 {offsets = [0, 0], sizes = [128, 1], strides = [1, 1]} : vector<128x8xf32> to vector<128x1xf32>
    %82 = tpu.iota {dimensions = array<i32: 0>} : vector<128x1xi32>
    %cst_33 = arith.constant 0.000000e+00 : f32
    %83 = vector.broadcast %cst_33 : f32 to vector<128x1xf32>
    %c0_i32_34 = arith.constant 0 : i32
    %c128_i32 = arith.constant 128 : i32
    %84 = arith.muli %c0_i32_34, %c128_i32 : i32
    %85 = tpu.assume_multiple %84, 128 : i32
    %c0_35 = arith.constant 0 : index
    %86 = arith.index_cast %85 : i32 to index
    %87 = vector.load %arg7[%c0_35, %86] : memref<1x128xf32, #tpu.memory_space<vmem>>, vector<1x128xf32>
    %88 = tpu.iota {dimensions = array<i32: 1>} : vector<1x128xi32>
    %89 = vector.broadcast %85 : i32 to vector<1x128xi32>
    %90 = arith.addi %89, %88 : vector<1x128xi32>
    %91 = vector.broadcast %87 : vector<1x128xf32> to vector<128x128xf32>
    %92 = vector.broadcast %81 : vector<128x1xf32> to vector<128x128xf32>
    %93 = arith.cmpf ogt, %91, %92 : vector<128x128xf32>
    %94 = vector.broadcast %87 : vector<1x128xf32> to vector<128x128xf32>
    %95 = vector.broadcast %81 : vector<128x1xf32> to vector<128x128xf32>
    %96 = arith.cmpf oeq, %94, %95 : vector<128x128xf32>
    %97 = vector.broadcast %90 : vector<1x128xi32> to vector<128x128xi32>
    %98 = vector.broadcast %82 : vector<128x1xi32> to vector<128x128xi32>
    %99 = arith.cmpi slt, %97, %98 : vector<128x128xi32>
    %100 = arith.andi %96, %99 : vector<128x128xi1>
    %101 = arith.ori %93, %100 : vector<128x128xi1>
    %cst_36 = arith.constant 1.000000e+00 : f32
    %cst_37 = arith.constant 0.000000e+00 : f32
    %102 = vector.broadcast %cst_36 : f32 to vector<128x128xf32>
    %103 = vector.broadcast %cst_37 : f32 to vector<128x128xf32>
    %104 = arith.select %101, %102, %103 : vector<128x128xi1>, vector<128x128xf32>
    %cst_38 = arith.constant dense<0.000000e+00> : vector<128xf32>
    %105 = vector.multi_reduction <add>, %104, %cst_38 [1] : vector<128x128xf32> to vector<128xf32>
    %106 = vector.shape_cast %105 : vector<128xf32> to vector<128x1xf32>
    %107 = arith.addf %83, %106 : vector<128x1xf32>
    %c1_i32 = arith.constant 1 : i32
    %cst_39 = arith.constant 3.000000e+00 : f32
    %108 = vector.broadcast %cst_39 : f32 to vector<1x1xf32>
    %109 = arith.mulf %108, %16 : vector<1x1xf32>
    %cst_40 = arith.constant 1.280000e+02 : f32
    %110 = vector.broadcast %cst_40 : f32 to vector<1x1xf32>
    %111 = arith.minimumf %109, %110 : vector<1x1xf32>
    %112 = vector.broadcast %111 : vector<1x1xf32> to vector<128x1xf32>
    %113 = arith.cmpf olt, %107, %112 : vector<128x1xf32>
    %114 = arith.extui %113 : vector<128x1xi1> to vector<128x1xi32>
    %115 = arith.sitofp %114 : vector<128x1xi32> to vector<128x1xf32>
    %116 = vector.shape_cast %74 : vector<1x128xf32> to vector<1x128xf32>
    %117 = vector.broadcast %116 : vector<1x128xf32> to vector<8x128xf32>
    %118 = tpu.transpose %117, [1, 0] : vector<8x128xf32> -> vector<128x8xf32>
    %119 = vector.extract_strided_slice %118 {offsets = [0, 0], sizes = [128, 1], strides = [1, 1]} : vector<128x8xf32> to vector<128x1xf32>
    %120 = arith.mulf %74, %14 : vector<1x128xf32>
    %cst_41 = arith.constant dense<0.000000e+00> : vector<1xf32>
    %121 = vector.multi_reduction <add>, %120, %cst_41 [1] : vector<1x128xf32> to vector<1xf32>
    %122 = vector.shape_cast %121 : vector<1xf32> to vector<1x1xf32>
    %123 = arith.mulf %119, %115 : vector<128x1xf32>
    %cst_42 = arith.constant dense<0.000000e+00> : vector<1xf32>
    %124 = vector.multi_reduction <add>, %123, %cst_42 [0] : vector<128x1xf32> to vector<1xf32>
    %125 = vector.shape_cast %124 : vector<1xf32> to vector<1x1xf32>
    %126 = arith.addf %122, %125 : vector<1x1xf32>
    %127 = arith.addf %56, %126 : vector<1x1xf32>
    %cst_43 = arith.constant 0.000000e+00 : f32
    %128 = vector.broadcast %cst_43 : f32 to vector<1x1xf32>
    %129 = arith.cmpf ogt, %16, %128 : vector<1x1xf32>
    %130 = arith.extui %129 : vector<1x1xi1> to vector<1x1xi32>
    %131 = arith.sitofp %130 : vector<1x1xi32> to vector<1x1xf32>
    %cst_44 = arith.constant 9.99999997E-7 : f32
    %132 = vector.broadcast %cst_44 : f32 to vector<1x1xf32>
    %133 = arith.maximumf %16, %132 : vector<1x1xf32>
    %134 = arith.mulf %127, %131 : vector<1x1xf32>
    %135 = arith.divf %134, %133 : vector<1x1xf32>
    %c0_45 = arith.constant 0 : index
    %c0_46 = arith.constant 0 : index
    %c0_47 = arith.constant 0 : index
    %136 = vector.load %arg6[%c0_45, %c0_46, %c0_47] : memref<1x1x1xf32, #tpu.memory_space<vmem>>, vector<1x1x1xf32>
    %137 = vector.shape_cast %136 : vector<1x1x1xf32> to vector<1x1xf32>
    %138 = vector.shape_cast %135 : vector<1x1xf32> to vector<1x1x1xf32>
    tpu.vector_store %arg6[%c0_45, %c0_46, %c0_47], %138 {strides = array<i32>} : memref<1x1x1xf32, #tpu.memory_space<vmem>>, vector<1x1x1xf32>,
    return
  }
  func.func @transform_0(%arg0: i32) -> (i32, i32, i32) {
    %c0_i32 = arith.constant 0 : i32
    %c0_i32_0 = arith.constant 0 : i32
    %c0_i32_1 = arith.constant 0 : i32
    return %arg0, %c0_i32, %c0_i32_0 : i32, i32, i32
  }
  func.func @transform_1(%arg0: i32) -> (i32, i32, i32) {
    %c0_i32 = arith.constant 0 : i32
    %c0_i32_0 = arith.constant 0 : i32
    %c0_i32_1 = arith.constant 0 : i32
    return %arg0, %c0_i32, %c0_i32_0 : i32, i32, i32
  }
  func.func @transform_2(%arg0: i32) -> (i32, i32, i32) {
    %c0_i32 = arith.constant 0 : i32
    %c0_i32_0 = arith.constant 0 : i32
    %c0_i32_1 = arith.constant 0 : i32
    return %arg0, %c0_i32, %c0_i32_0 : i32, i32, i32
  }
  func.func @transform_3(%arg0: i32) -> (i32, i32, i32) {
    %c0_i32 = arith.constant 0 : i32
    %c0_i32_0 = arith.constant 0 : i32
    %c0_i32_1 = arith.constant 0 : i32
    return %arg0, %c0_i32, %c0_i32_0 : i32, i32, i32
  }
  func.func @transform_4(%arg0: i32) -> (i32, i32) {
    %c0_i32 = arith.constant 0 : i32
    %c0_i32_0 = arith.constant 0 : i32
    %c0_i32_1 = arith.constant 0 : i32
    return %c0_i32, %c0_i32_0 : i32, i32
  }
  func.func @transform_5(%arg0: i32) -> (i32, i32, i32) {
    %c0_i32 = arith.constant 0 : i32
    %c0_i32_0 = arith.constant 0 : i32
    %c0_i32_1 = arith.constant 0 : i32
    return %arg0, %c0_i32, %c0_i32_0 : i32, i32, i32
  }
}

</mosaic_0001>

<llo_original>
// kernel: ssd_loss.1
$region0: #{ssd_loss.1}
  #allocation0 [shape = 'u32[]', space=smem, size = 0x4, offset = 0x4, fixed_abs, tag = 'smem constant byte address 0x4 - core index']
  #allocation1 [shape = 'u32[144,128]{1,0:T(1,128)}', space=vmem, size = 0x12000, scoped, tag = 'internal scratch']
  #allocation2 [shape = 'f32[1,128]{1,0:T(1,128)}', space=vmem, size = 0x200, scoped, tag = 'scratch operand']
  %s0 = inlined_call_operand.vmem [shape: f32[2,4,128], index: 0, kind: input, shape index: {}]
  %s1 = inlined_call_operand.vmem [shape: f32[2,8,128], index: 1, kind: input, shape index: {}]
  %s2 = inlined_call_operand.vmem [shape: f32[2,4,128], index: 2, kind: input, shape index: {}]
  %s3 = inlined_call_operand.vmem [shape: s32[2,1,128], index: 3, kind: input, shape index: {}]
  %s4 = inlined_call_operand.vmem [shape: f32[6,128], index: 4, kind: input, shape index: {}]
  %s5 = inlined_call_operand.vmem [shape: f32[2,1,1], index: 5, kind: output, shape index: {}]
  %s6 = sld [smem:[#allocation0]]
  $region53: #{ssd_loss.1} parent=0
    _
  %s8 = ssub.s32 1, %s6
  %s9 = scalar_select 0, %s8, %s6
  loop: start=0, step=1, limit=4
  $region2: #{ssd_loss.1} parent=0 // loop_pre_header
    _
  $region3: #{ssd_loss.1} parent=0 // loop_header
    %s11 = sphi 0, %s15
    %p12 = scmp.ge.s32.totalorder %s11, 4
    %s21 = sphi 0, %s23
    %s24 = sphi 0, %s21
    %s25 = sphi 0, %s24
    %s41 = sphi 0, %s25
    %s47 = sphi 0, %s49
    %s50 = sphi 0, %s47
    %s51 = sphi 0, %s50
    %s67 = sphi 0, %s51
    %s73 = sphi 0, %s75
    %s76 = sphi 0, %s73
    %s77 = sphi 0, %s76
    %s93 = sphi 0, %s77
    %s99 = sphi 0, %s101
    %s102 = sphi 0, %s99
    %s103 = sphi 0, %s102
    %s119 = sphi 0, %s103
    %s123 = sphi 0, %s123
    %s125 = sphi 0, %s123
    %s126 = sphi 0, %s125
    %s140 = sphi 0, %s126
    %s146 = sphi 0, %s148
    %s149 = sphi 0, %s146
    %s150 = sphi 0, %s149
    %s166 = sphi 0, %s150
  $region4: #{ssd_loss.1} parent=0 // loop_header_branch
    %14 = sbr.rel (%p12) target = $region8
  $region5: #{ssd_loss.1} parent=0 // loop_body
    %s16 = ssub.s32 %s11, 1
    %s17 = ssub.s32 %s11, 2
    %s18 = sadd.s32 %s11, 1
    %s19 = ssub.s32 %s11, %s18
    %p20 = scmp.eq.s32.totalorder %s19, 0
    %s22 = sadd.s32 %s21, 1
    %s23 = scalar_select %p20, %s21, %s22
    %p26 = pneg %p20
    %p27 = scmp.eq.s32.totalorder %s11, 1
    %p28 = por %p26, %p27
    %p29 = scmp.ne.s32.totalorder %s21, %s24
    %p30 = scmp.eq.s32.totalorder %s11, 0
    %p31 = por %p29, %p30
    %p32 = scmp.ne.s32.totalorder %s21, %s24
    %p33 = scmp.eq.s32.totalorder %s16, 1
    %p34 = por %p32, %p33
    %p35 = scmp.ne.s32.totalorder %s24, %s25
    %p36 = scmp.eq.s32.totalorder %s16, 0
    %p37 = por %p35, %p36
    %p38 = scmp.ne.s32.totalorder %s24, %s25
    %p39 = scmp.eq.s32.totalorder %s17, 1
    %p40 = por %p38, %p39
    %p42 = scmp.ne.s32.totalorder %s25, %s41
    %p43 = scmp.eq.s32.totalorder %s17, 0
    %p44 = por %p42, %p43
    %s45 = ssub.s32 %s11, %s18
    %p46 = scmp.eq.s32.totalorder %s45, 0
    %s48 = sadd.s32 %s47, 1
    %s49 = scalar_select %p46, %s47, %s48
    %p52 = pneg %p46
    %p53 = scmp.eq.s32.totalorder %s11, 1
    %p54 = por %p52, %p53
    %p55 = scmp.ne.s32.totalorder %s47, %s50
    %p56 = scmp.eq.s32.totalorder %s11, 0
    %p57 = por %p55, %p56
    %p58 = scmp.ne.s32.totalorder %s47, %s50
    %p59 = scmp.eq.s32.totalorder %s16, 1
    %p60 = por %p58, %p59
    %p61 = scmp.ne.s32.totalorder %s50, %s51
    %p62 = scmp.eq.s32.totalorder %s16, 0
    %p63 = por %p61, %p62
    %p64 = scmp.ne.s32.totalorder %s50, %s51
    %p65 = scmp.eq.s32.totalorder %s17, 1
    %p66 = por %p64, %p65
    %p68 = scmp.ne.s32.totalorder %s51, %s67
    %p69 = scmp.eq.s32.totalorder %s17, 0
    %p70 = por %p68, %p69
    %s71 = ssub.s32 %s11, %s18
    %p72 = scmp.eq.s32.totalorder %s71, 0
    %s74 = sadd.s32 %s73, 1
    %s75 = scalar_select %p72, %s73, %s74
    %p78 = pneg %p72
    %p79 = scmp.eq.s32.totalorder %s11, 1
    %p80 = por %p78, %p79
    %p81 = scmp.ne.s32.totalorder %s73, %s76
    %p82 = scmp.eq.s32.totalorder %s11, 0
    %p83 = por %p81, %p82
    %p84 = scmp.ne.s32.totalorder %s73, %s76
    %p85 = scmp.eq.s32.totalorder %s16, 1
    %p86 = por %p84, %p85
    %p87 = scmp.ne.s32.totalorder %s76, %s77
    %p88 = scmp.eq.s32.totalorder %s16, 0
    %p89 = por %p87, %p88
    %p90 = scmp.ne.s32.totalorder %s76, %s77
    %p91 = scmp.eq.s32.totalorder %s17, 1
    %p92 = por %p90, %p91
    %p94 = scmp.ne.s32.totalorder %s77, %s93
    %p95 = scmp.eq.s32.totalorder %s17, 0
    %p96 = por %p94, %p95
    %s97 = ssub.s32 %s11, %s18
    %p98 = scmp.eq.s32.totalorder %s97, 0
    %s100 = sadd.s32 %s99, 1
    %s101 = scalar_select %p98, %s99, %s100
    %p104 = pneg %p98
    %p105 = scmp.eq.s32.totalorder %s11, 1
    %p106 = por %p104, %p105
    %p107 = scmp.ne.s32.totalorder %s99, %s102
    %p108 = scmp.eq.s32.totalorder %s11, 0
    %p109 = por %p107, %p108
    %p110 = scmp.ne.s32.totalorder %s99, %s102
    %p111 = scmp.eq.s32.totalorder %s16, 1
    %p112 = por %p110, %p111
    %p113 = scmp.ne.s32.totalorder %s102, %s103
    %p114 = scmp.eq.s32.totalorder %s16, 0
    %p115 = por %p113, %p114
    %p116 = scmp.ne.s32.totalorder %s102, %s103
    %p117 = scmp.eq.s32.totalorder %s17, 1
    %p118 = por %p116, %p117
    %p120 = scmp.ne.s32.totalorder %s103, %s119
    %p121 = scmp.eq.s32.totalorder %s17, 0
    %p122 = por %p120, %p121
    %s124 = sadd.s32 %s123, 1
    %p127 = scmp.eq.s32.totalorder %s11, 1
    %p128 = scmp.ne.s32.totalorder %s123, %s125
    %p129 = scmp.eq.s32.totalorder %s11, 0
    %p130 = por %p128, %p129
    %p131 = scmp.ne.s32.totalorder %s123, %s125
    %p132 = scmp.eq.s32.totalorder %s16, 1
    %p133 = por %p131, %p132
    %p134 = scmp.ne.s32.totalorder %s125, %s126
    %p135 = scmp.eq.s32.totalorder %s16, 0
    %p136 = por %p134, %p135
    %p137 = scmp.ne.s32.totalorder %s125, %s126
    %p138 = scmp.eq.s32.totalorder %s17, 1
    %p139 = por %p137, %p138
    %p141 = scmp.ne.s32.totalorder %s126, %s140
    %p142 = scmp.eq.s32.totalorder %s17, 0
    %p143 = por %p141, %p142
    %s144 = ssub.s32 %s11, %s18
    %p145 = scmp.eq.s32.totalorder %s144, 0
    %s147 = sadd.s32 %s146, 1
    %s148 = scalar_select %p145, %s146, %s147
    %p151 = pneg %p145
    %p152 = scmp.eq.s32.totalorder %s11, 1
    %p153 = por %p151, %p152
    %p154 = scmp.ne.s32.totalorder %s146, %s149
    %p155 = scmp.eq.s32.totalorder %s11, 0
    %p156 = por %p154, %p155
    %p157 = scmp.ne.s32.totalorder %s146, %s149
    %p158 = scmp.eq.s32.totalorder %s16, 1
    %p159 = por %p157, %p158
    %p160 = scmp.ne.s32.totalorder %s149, %s150
    %p161 = scmp.eq.s32.totalorder %s16, 0
    %p162 = por %p160, %p161
    %p163 = scmp.ne.s32.totalorder %s149, %s150
    %p164 = scmp.eq.s32.totalorder %s17, 1
    %p165 = por %p163, %p164
    %p167 = scmp.ne.s32.totalorder %s150, %s166
    %p168 = scmp.eq.s32.totalorder %s17, 0
    %p169 = por %p167, %p168
    %p170 = scmp.le.s32.totalorder 1, %s11
    %p171 = scmp.lt.s32.totalorder %s11, 3
    %p172 = pnand %p170, %p171
    %p173 = pneg %p172
    // Predicated region
    $region9: #{ssd_loss.1} parent=5 // pred_check
      _
    $region10: #{ssd_loss.1} parent=5 // pred_check_branch
      %175 = sbr.rel (%p172) target = $region12
    $region11: #{ssd_loss.1} parent=5 // pred_region
      %s176 = ssub.s32 %s11, 1
      // Predicated region
      $region13: #{ssd_loss.1} parent=11 // pred_check
        %p177 = pneg %p136
      $region14: #{ssd_loss.1} parent=11 // pred_check_branch
        %179 = sbr.rel (%p177) target = $region16
      $region15: #{ssd_loss.1} parent=11 // pred_region
        _
      $region16: #{ssd_loss.1} parent=11 // pred_fallthru
        _
    $region12: #{ssd_loss.1} parent=5 // pred_fallthru
      _
    %p180 = scmp.lt.s32.totalorder %s11, 2
    // Predicated region
    $region17: #{ssd_loss.1} parent=5 // pred_check
      %p181 = pneg %p180
    $region18: #{ssd_loss.1} parent=5 // pred_check_branch
      %183 = sbr.rel (%p181) target = $region20
    $region19: #{ssd_loss.1} parent=5 // pred_region
      // Predicated region
      $region21: #{ssd_loss.1} parent=19 // pred_check
        %p184 = pneg %p31
      $region22: #{ssd_loss.1} parent=19 // pred_check_branch
        %186 = sbr.rel (%p184) target = $region24
      $region23: #{ssd_loss.1} parent=19 // pred_region
        %p187 = scmp.lt.s32.totalorder %s11, 1
        %s188 = scalar_select %p187, %s11, 1
        %s189 = smul.addr %s188, 4
        %s190 = scalar_lea.vmem %s0, %s189
      $region24: #{ssd_loss.1} parent=19 // pred_fallthru
        _
      // Predicated region
      $region25: #{ssd_loss.1} parent=19 // pred_check
        %p191 = pneg %p57
      $region26: #{ssd_loss.1} parent=19 // pred_check_branch
        %193 = sbr.rel (%p191) target = $region28
      $region27: #{ssd_loss.1} parent=19 // pred_region
        %p194 = scmp.lt.s32.totalorder %s11, 1
        %s195 = scalar_select %p194, %s11, 1
        %s196 = smul.addr %s195, 8
        %s197 = scalar_lea.vmem %s1, %s196
      $region28: #{ssd_loss.1} parent=19 // pred_fallthru
        _
      // Predicated region
      $region29: #{ssd_loss.1} parent=19 // pred_check
        %p198 = pneg %p83
      $region30: #{ssd_loss.1} parent=19 // pred_check_branch
        %200 = sbr.rel (%p198) target = $region32
      $region31: #{ssd_loss.1} parent=19 // pred_region
        %p201 = scmp.lt.s32.totalorder %s11, 1
        %s202 = scalar_select %p201, %s11, 1
        %s203 = smul.addr %s202, 4
        %s204 = scalar_lea.vmem %s2, %s203
      $region32: #{ssd_loss.1} parent=19 // pred_fallthru
        _
      // Predicated region
      $region33: #{ssd_loss.1} parent=19 // pred_check
        %p205 = pneg %p109
      $region34: #{ssd_loss.1} parent=19 // pred_check_branch
        %207 = sbr.rel (%p205) target = $region36
      $region35: #{ssd_loss.1} parent=19 // pred_region
        %p208 = scmp.lt.s32.totalorder %s11, 1
        %s209 = scalar_select %p208, %s11, 1
        %s210 = scalar_lea.vmem %s3, %s209
      $region36: #{ssd_loss.1} parent=19 // pred_fallthru
        _
    $region20: #{ssd_loss.1} parent=5 // pred_fallthru
      _
    %p211 = scmp.le.s32.totalorder 1, %s11
    %p212 = scmp.lt.s32.totalorder %s11, 3
    %p213 = pnand %p211, %p212
    %p214 = pneg %p213
    // Predicated region
    $region37: #{ssd_loss.1} parent=5 // pred_check
      _
    $region38: #{ssd_loss.1} parent=5 // pred_check_branch
      %216 = sbr.rel (%p213) target = $region40
    $region39: #{ssd_loss.1} parent=5 // pred_region
      %s217 = ssub.s32 %s11, 1
      %p218 = scmp.lt.s32.totalorder %s16, 1
      %s219 = scalar_select %p218, %s16, 1
      %s220 = smul.addr %s219, 4
      %s221 = scalar_lea.vmem %s0, %s220
      %p222 = pneg %p37
      %p223 = pneg %p34
      %p224 = scmp.lt.s32.totalorder %s16, 1
      %s225 = scalar_select %p224, %s16, 1
      %s226 = smul.addr %s225, 8
      %s227 = scalar_lea.vmem %s1, %s226
      %p228 = pneg %p63
      %p229 = pneg %p60
      %p230 = scmp.lt.s32.totalorder %s16, 1
      %s231 = scalar_select %p230, %s16, 1
      %s232 = smul.addr %s231, 4
      %s233 = scalar_lea.vmem %s2, %s232
      %p234 = pneg %p89
      %p235 = pneg %p86
      %p236 = scmp.lt.s32.totalorder %s16, 1
      %s237 = scalar_select %p236, %s16, 1
      %s238 = scalar_lea.vmem %s3, %s237
      %p239 = pneg %p115
      %p240 = pneg %p112
      %p241 = pneg %p136
      %p242 = pneg %p133
      %p243 = pneg %p162
      %p244 = pneg %p159
      %p245 = scmp.lt.s32.totalorder %s16, 1
      %s246 = scalar_select %p245, %s16, 1
      %s247 = scalar_lea.vmem %s5, %s246
      %p248 = scmp.lt.s32.totalorder %s16, 1
      %s249 = scalar_select %p248, %s16, 1
      %s250 = smul.addr %s249, 4
      %s251 = scalar_lea.vmem %s0, %s250
      %p252 = scmp.lt.s32.totalorder %s16, 1
      %s253 = scalar_select %p252, %s16, 1
      %s254 = smul.addr %s253, 8
      %s255 = scalar_lea.vmem %s1, %s254
      %p256 = scmp.lt.s32.totalorder %s16, 1
      %s257 = scalar_select %p256, %s16, 1
      %s258 = smul.addr %s257, 4
      %s259 = scalar_lea.vmem %s2, %s258
      %p260 = scmp.lt.s32.totalorder %s16, 1
      %s261 = scalar_select %p260, %s16, 1
      %s262 = scalar_lea.vmem %s3, %s261
      %p263 = scmp.lt.s32.totalorder %s16, 1
      %s264 = scalar_select %p263, %s16, 1
      %s265 = scalar_lea.vmem %s5, %s264
      %v266 = vld [vmem:[%s251] sm:$0xf]
      %v267 = vld [vmem:[%s255] sm:$0xff]
      %v268 = vld [vmem:[%s259] sm:$0xf]
      %v269 = vld [vmem:[%s262] sm:$0x1]
      %v270 = vld [vmem:[%s4] sm:$0x3]
      %v271 = vld [vmem:[%s4 + $0x2] sm:$0x3]
      %v272 = vld [vmem:[%s4 + $0x4] sm:$0x3]
      %vm273 = vcmp.gt.s32.totalorder %v269, 0
      %v274 = vsel %vm273, 1, 0
      %v275 = vcvt.s32.f32 %v274
      %vm276 = vcmask 1040384
      %v277 = vsel %vm276, %v275, 0.0
      %278 = vadd.xlane.f32.xlu0 %v277
      %v279 = vpop.xlane.xlu0 %278
      %v280 = vsub.f32 %v268, %v270
      %v281 = vmul.f32 %v280, 10.0
      %v282 = vmul.f32 %v281, %v271
      %v283 = vlog2.pop %v268
      %v284 = vmul.f32 %v283, 0.6931472
      %v286 = vrot.slane %v272, 6
      %v288 = vsub.f32 %v284, %v286
      %v289 = vmul.f32 %v288, 5.0
      %v290 = vsub.f32 %v266, %v282
      %v291 = vand.u32 2147483647, %v290
      %vm292 = vcmp.lt.f32.partialorder %v291, 1.0
      %v293 = vmul.f32 %v290, 0.5
      %v294 = vmul.f32 %v293, %v290
      %v295 = vsub.f32 %v291, 0.5
      %v296 = vsel %vm292, %v294, %v295
      %vm297 = vcmask 1041408
      %v298 = vsel %vm297, %v296, 0.0
      %v299 = vrot.slane %v298, 4
      %v300 = vadd.f32 %v298, %v299
      %v301 = vrot.slane %v300, 2
      %v302 = vadd.f32 %v300, %v301
      %v303 = vrot.slane %v302, 1
      %v304 = vadd.f32 %v302, %v303
      %v305 = vsub.f32 %v266, %v289
      %v306 = vand.u32 2147483647, %v305
      %vm307 = vcmp.lt.f32.partialorder %v306, 1.0
      %v308 = vmul.f32 %v305, 0.5
      %v309 = vmul.f32 %v308, %v305
      %v310 = vsub.f32 %v306, 0.5
      %v311 = vsel %vm307, %v309, %v310
      %v313 = vrot.slane %v311, 2
      %v315 = vsel %vm297, %v313, 0.0
      %v316 = vrot.slane %v315, 4
      %v317 = vadd.f32 %v315, %v316
      %v318 = vrot.slane %v317, 2
      %v319 = vadd.f32 %v317, %v318
      %v320 = vrot.slane %v319, 1
      %v321 = vadd.f32 %v319, %v320
      %v322 = vadd.f32 %v304, %v321
      %v323 = vmul.f32 %v275, %v322
      %v324 = vsel %vm276, %v323, 0.0
      %325 = vadd.xlane.f32.xlu0 %v324
      %v326 = vpop.xlane.xlu0 %325
      %v327 = vrot.slane %v267, 4
      %v328 = vmax.f32 %v267, %v327
      %v329 = vrot.slane %v328, 2
      %v330 = vmax.f32 %v328, %v329
      %v331 = vrot.slane %v330, 1
      %v332 = vmax.f32 %v330, %v331
      %v333 = vsub.f32 %v267, %v332
      %v334 = vmul.f32 %v333, 1.442695
      %v335 = vpow.pop %v334
      %v336 = vrot.slane %v335, 4
      %v337 = vadd.f32 %v335, %v336
      %v338 = vrot.slane %v337, 2
      %v339 = vadd.f32 %v337, %v338
      %v340 = vrot.slane %v339, 1
      %v341 = vadd.f32 %v339, %v340
      %v342 = vlog2.pop %v341
      %v343 = vmul.f32 %v342, 0.6931472
      %v344 = vadd.f32 %v332, %v343
      %v345 = vlaneseq
      %v346 = vshrl.u32 %v345, 7
      %v347 = vlaneseq
      %v348 = vshrl.u32 %v347, 7
      %v349 = vsub.s32 0, %v348
      %v350 = vrot.slane %v269, %v349
      %vm351 = vcmp.eq.s32.totalorder %v346, %v350
      %v352 = vsel %vm351, %v267, 0.0
      %v353 = vrot.slane %v352, 4
      %v354 = vadd.f32 %v352, %v353
      %v355 = vrot.slane %v354, 2
      %v356 = vadd.f32 %v354, %v355
      %v357 = vrot.slane %v356, 1
      %v358 = vadd.f32 %v356, %v357
      %v359 = vsub.f32 %v344, %v358
      %v360 = vsel %vm273, 0.0, %v359
      %361 = vst [vmem:[#allocation2] sm:$0x1] %v360
      %v363 = vlaneseq
      %v364 = vshrl.u32 %v363, 7
      %v365 = vsub.s32 0, %v364
      %v366 = vrot.slane %v360, %v365
      %368 = vxpose.xlu0.b32.start [1/16] %v366, 128
      %369 = vxpose.xlu0.b32.cont [2/16] 0.0, 128
      %370 = vxpose.xlu0.b32.cont [3/16] 0.0, 128
      %371 = vxpose.xlu0.b32.cont [4/16] 0.0, 128
      %372 = vxpose.xlu0.b32.cont [5/16] 0.0, 128
      %373 = vxpose.xlu0.b32.cont [6/16] 0.0, 128
      %374 = vxpose.xlu0.b32.cont [7/16] 0.0, 128
      %375 = vxpose.xlu0.b32.cont [8/16] 0.0, 128
      %376 = vxpose.xlu0.b32.cont [9/16] 0.0, 128
      %377 = vxpose.xlu0.b32.cont [10/16] 0.0, 128
      %378 = vxpose.xlu0.b32.cont [11/16] 0.0, 128
      %379 = vxpose.xlu0.b32.cont [12/16] 0.0, 128
      %380 = vxpose.xlu0.b32.cont [13/16] 0.0, 128
      %381 = vxpose.xlu0.b32.cont [14/16] 0.0, 128
      %382 = vxpose.xlu0.b32.cont [15/16] 0.0, 128
      %383 = vxpose.xlu0.b32.end [16/16] 0.0, 128
      %v384 = vpop.trf.xlu0
      %v385 = vpop.trf.xlu0
      %v386 = vpop.trf.xlu0
      %v387 = vpop.trf.xlu0
      %v388 = vpop.trf.xlu0
      %v389 = vpop.trf.xlu0
      %v390 = vpop.trf.xlu0
      %v391 = vpop.trf.xlu0
      %v392 = vpop.trf.xlu0
      %v393 = vpop.trf.xlu0
      %v394 = vpop.trf.xlu0
      %v395 = vpop.trf.xlu0
      %v396 = vpop.trf.xlu0
      %v397 = vpop.trf.xlu0
      %v398 = vpop.trf.xlu0
      %v399 = vpop.trf.xlu0
      %v400 = vadd.s32 %v346, 8
      %v401 = vadd.s32 %v346, 16
      %v402 = vadd.s32 %v346, 24
      %v403 = vadd.s32 %v346, 32
      %v404 = vadd.s32 %v346, 40
      %v405 = vadd.s32 %v346, 48
      %v406 = vadd.s32 %v346, 56
      %v407 = vadd.s32 %v346, 64
      %v408 = vadd.s32 %v346, 72
      %v409 = vadd.s32 %v346, 80
      %v410 = vadd.s32 %v346, 88
      %v411 = vadd.s32 %v346, 96
      %v412 = vadd.s32 %v346, 104
      %v413 = vadd.s32 %v346, 112
      %v414 = vadd.s32 %v346, 120
      %v415 = vld [vmem:[#allocation2] sm:$0x1]
      %v416 = vlaneseq
      %v417 = vand.u32 %v416, 127
      %v418 = vstv 0
      %v419 = vadd.s32 %v418, %v417
      %v421 = vlaneseq
      %v422 = vshrl.u32 %v421, 7
      %v423 = vsub.s32 0, %v422
      %v424 = vrot.slane %v415, %v423
      %427 = vset.pattern.permute.xlu0 0
      %428 = vperm.xlu0 %427, %v384
      %v429 = vpop.permute.xlu0 %428
      %432 = vset.pattern.permute.xlu0 0
      %433 = vperm.xlu0 %432, %v385
      %v434 = vpop.permute.xlu0 %433
      %437 = vset.pattern.permute.xlu0 0
      %438 = vperm.xlu0 %437, %v386
      %v439 = vpop.permute.xlu0 %438
      %442 = vset.pattern.permute.xlu0 0
      %443 = vperm.xlu0 %442, %v387
      %v444 = vpop.permute.xlu0 %443
      %447 = vset.pattern.permute.xlu0 0
      %448 = vperm.xlu0 %447, %v388
      %v449 = vpop.permute.xlu0 %448
      %452 = vset.pattern.permute.xlu0 0
      %453 = vperm.xlu0 %452, %v389
      %v454 = vpop.permute.xlu0 %453
      %457 = vset.pattern.permute.xlu0 0
      %458 = vperm.xlu0 %457, %v390
      %v459 = vpop.permute.xlu0 %458
      %462 = vset.pattern.permute.xlu0 0
      %463 = vperm.xlu0 %462, %v391
      %v464 = vpop.permute.xlu0 %463
      %467 = vset.pattern.permute.xlu0 0
      %468 = vperm.xlu0 %467, %v392
      %v469 = vpop.permute.xlu0 %468
      %472 = vset.pattern.permute.xlu0 0
      %473 = vperm.xlu0 %472, %v393
      %v474 = vpop.permute.xlu0 %473
      %477 = vset.pattern.permute.xlu0 0
      %478 = vperm.xlu0 %477, %v394
      %v479 = vpop.permute.xlu0 %478
      %482 = vset.pattern.permute.xlu0 0
      %483 = vperm.xlu0 %482, %v395
      %v484 = vpop.permute.xlu0 %483
      %487 = vset.pattern.permute.xlu0 0
      %488 = vperm.xlu0 %487, %v396
      %v489 = vpop.permute.xlu0 %488
      %492 = vset.pattern.permute.xlu0 0
      %493 = vperm.xlu0 %492, %v397
      %v494 = vpop.permute.xlu0 %493
      %497 = vset.pattern.permute.xlu0 0
      %498 = vperm.xlu0 %497, %v398
      %v499 = vpop.permute.xlu0 %498
      %502 = vset.pattern.permute.xlu0 0
      %503 = vperm.xlu0 %502, %v399
      %v504 = vpop.permute.xlu0 %503
      %vm506 = vcmp.gt.f32.partialorder %v424, %v429
      %vm507 = vcmp.gt.f32.partialorder %v424, %v434
      %vm508 = vcmp.gt.f32.partialorder %v424, %v439
      %vm509 = vcmp.gt.f32.partialorder %v424, %v444
      %vm510 = vcmp.gt.f32.partialorder %v424, %v449
      %vm511 = vcmp.gt.f32.partialorder %v424, %v454
      %vm512 = vcmp.gt.f32.partialorder %v424, %v459
      %vm513 = vcmp.gt.f32.partialorder %v424, %v464
      %vm514 = vcmp.gt.f32.partialorder %v424, %v469
      %vm515 = vcmp.gt.f32.partialorder %v424, %v474
      %vm516 = vcmp.gt.f32.partialorder %v424, %v479
      %vm517 = vcmp.gt.f32.partialorder %v424, %v484
      %vm518 = vcmp.gt.f32.partialorder %v424, %v489
      %vm519 = vcmp.gt.f32.partialorder %v424, %v494
      %vm520 = vcmp.gt.f32.partialorder %v424, %v499
      %vm521 = vcmp.gt.f32.partialorder %v424, %v504
      %vm522 = vcmp.eq.f32.partialorder %v424, %v429
      %vm523 = vcmp.eq.f32.partialorder %v424, %v434
      %vm524 = vcmp.eq.f32.partialorder %v424, %v439
      %vm525 = vcmp.eq.f32.partialorder %v424, %v444
      %vm526 = vcmp.eq.f32.partialorder %v424, %v449
      %vm527 = vcmp.eq.f32.partialorder %v424, %v454
      %vm528 = vcmp.eq.f32.partialorder %v424, %v459
      %vm529 = vcmp.eq.f32.partialorder %v424, %v464
      %vm530 = vcmp.eq.f32.partialorder %v424, %v469
      %vm531 = vcmp.eq.f32.partialorder %v424, %v474
      %vm532 = vcmp.eq.f32.partialorder %v424, %v479
      %vm533 = vcmp.eq.f32.partialorder %v424, %v484
      %vm534 = vcmp.eq.f32.partialorder %v424, %v489
      %vm535 = vcmp.eq.f32.partialorder %v424, %v494
      %vm536 = vcmp.eq.f32.partialorder %v424, %v499
      %vm537 = vcmp.eq.f32.partialorder %v424, %v504
      %vm538 = vcmp.lt.s32.totalorder %v419, %v346
      %vm539 = vcmp.lt.s32.totalorder %v419, %v400
      %vm540 = vcmp.lt.s32.totalorder %v419, %v401
      %vm541 = vcmp.lt.s32.totalorder %v419, %v402
      %vm542 = vcmp.lt.s32.totalorder %v419, %v403
      %vm543 = vcmp.lt.s32.totalorder %v419, %v404
      %vm544 = vcmp.lt.s32.totalorder %v419, %v405
      %vm545 = vcmp.lt.s32.totalorder %v419, %v406
      %vm546 = vcmp.lt.s32.totalorder %v419, %v407
      %vm547 = vcmp.lt.s32.totalorder %v419, %v408
      %vm548 = vcmp.lt.s32.totalorder %v419, %v409
      %vm549 = vcmp.lt.s32.totalorder %v419, %v410
      %vm550 = vcmp.lt.s32.totalorder %v419, %v411
      %vm551 = vcmp.lt.s32.totalorder %v419, %v412
      %vm552 = vcmp.lt.s32.totalorder %v419, %v413
      %vm553 = vcmp.lt.s32.totalorder %v419, %v414
      %vm554 = vmand %vm522, %vm538
      %vm555 = vmand %vm523, %vm539
      %vm556 = vmand %vm524, %vm540
      %vm557 = vmand %vm525, %vm541
      %vm558 = vmand %vm526, %vm542
      %vm559 = vmand %vm527, %vm543
      %vm560 = vmand %vm528, %vm544
      %vm561 = vmand %vm529, %vm545
      %vm562 = vmand %vm530, %vm546
      %vm563 = vmand %vm531, %vm547
      %vm564 = vmand %vm532, %vm548
      %vm565 = vmand %vm533, %vm549
      %vm566 = vmand %vm534, %vm550
      %vm567 = vmand %vm535, %vm551
      %vm568 = vmand %vm536, %vm552
      %vm569 = vmand %vm537, %vm553
      %vm570 = vmor %vm506, %vm554
      %vm571 = vmor %vm507, %vm555
      %vm572 = vmor %vm508, %vm556
      %vm573 = vmor %vm509, %vm557
      %vm574 = vmor %vm510, %vm558
      %vm575 = vmor %vm511, %vm559
      %vm576 = vmor %vm512, %vm560
      %vm577 = vmor %vm513, %vm561
      %vm578 = vmor %vm514, %vm562
      %vm579 = vmor %vm515, %vm563
      %vm580 = vmor %vm516, %vm564
      %vm581 = vmor %vm517, %vm565
      %vm582 = vmor %vm518, %vm566
      %vm583 = vmor %vm519, %vm567
      %vm584 = vmor %vm520, %vm568
      %vm585 = vmor %vm521, %vm569
      %v586 = vsel %vm570, 1.0, 0.0
      %v587 = vsel %vm571, 1.0, 0.0
      %v588 = vsel %vm572, 1.0, 0.0
      %v589 = vsel %vm573, 1.0, 0.0
      %v590 = vsel %vm574, 1.0, 0.0
      %v591 = vsel %vm575, 1.0, 0.0
      %v592 = vsel %vm576, 1.0, 0.0
      %v593 = vsel %vm577, 1.0, 0.0
      %v594 = vsel %vm578, 1.0, 0.0
      %v595 = vsel %vm579, 1.0, 0.0
      %v596 = vsel %vm580, 1.0, 0.0
      %v597 = vsel %vm581, 1.0, 0.0
      %v598 = vsel %vm582, 1.0, 0.0
      %v599 = vsel %vm583, 1.0, 0.0
      %v600 = vsel %vm584, 1.0, 0.0
      %v601 = vsel %vm585, 1.0, 0.0
      %602 = vadd.xlane.f32.xlu0 %v586
      %v603 = vpop.xlane.xlu0 %602
      %604 = vadd.xlane.f32.xlu0 %v587
      %v605 = vpop.xlane.xlu0 %604
      %606 = vadd.xlane.f32.xlu0 %v588
      %v607 = vpop.xlane.xlu0 %606
      %608 = vadd.xlane.f32.xlu0 %v589
      %v609 = vpop.xlane.xlu0 %608
      %610 = vadd.xlane.f32.xlu0 %v590
      %v611 = vpop.xlane.xlu0 %610
      %612 = vadd.xlane.f32.xlu0 %v591
      %v613 = vpop.xlane.xlu0 %612
      %614 = vadd.xlane.f32.xlu0 %v592
      %v615 = vpop.xlane.xlu0 %614
      %616 = vadd.xlane.f32.xlu0 %v593
      %v617 = vpop.xlane.xlu0 %616
      %618 = vadd.xlane.f32.xlu0 %v594
      %v619 = vpop.xlane.xlu0 %618
      %620 = vadd.xlane.f32.xlu0 %v595
      %v621 = vpop.xlane.xlu0 %620
      %622 = vadd.xlane.f32.xlu0 %v596
      %v623 = vpop.xlane.xlu0 %622
      %624 = vadd.xlane.f32.xlu0 %v597
      %v625 = vpop.xlane.xlu0 %624
      %626 = vadd.xlane.f32.xlu0 %v598
      %v627 = vpop.xlane.xlu0 %626
      %628 = vadd.xlane.f32.xlu0 %v599
      %v629 = vpop.xlane.xlu0 %628
      %630 = vadd.xlane.f32.xlu0 %v600
      %v631 = vpop.xlane.xlu0 %630
      %632 = vadd.xlane.f32.xlu0 %v601
      %v633 = vpop.xlane.xlu0 %632
      %v634 = vadd.f32 %v603, 0.0
      %v635 = vadd.f32 %v605, 0.0
      %v636 = vadd.f32 %v607, 0.0
      %v637 = vadd.f32 %v609, 0.0
      %v638 = vadd.f32 %v611, 0.0
      %v639 = vadd.f32 %v613, 0.0
      %v640 = vadd.f32 %v615, 0.0
      %v641 = vadd.f32 %v617, 0.0
      %v642 = vadd.f32 %v619, 0.0
      %v643 = vadd.f32 %v621, 0.0
      %v644 = vadd.f32 %v623, 0.0
      %v645 = vadd.f32 %v625, 0.0
      %v646 = vadd.f32 %v627, 0.0
      %v647 = vadd.f32 %v629, 0.0
      %v648 = vadd.f32 %v631, 0.0
      %v649 = vadd.f32 %v633, 0.0
      %v650 = vmul.f32 %v279, 3.0
      %v651 = vmin.f32 %v650, 128.0
      %v652 = vlaneseq
      %v653 = vshrl.u32 %v652, 7
      %v654 = vsub.s32 0, %v653
      %v655 = vrot.slane %v651, %v654
      %vm656 = vcmp.lt.f32.partialorder %v634, %v655
      %vm657 = vcmp.lt.f32.partialorder %v635, %v655
      %vm658 = vcmp.lt.f32.partialorder %v636, %v655
      %vm659 = vcmp.lt.f32.partialorder %v637, %v655
      %vm660 = vcmp.lt.f32.partialorder %v638, %v655
      %vm661 = vcmp.lt.f32.partialorder %v639, %v655
      %vm662 = vcmp.lt.f32.partialorder %v640, %v655
      %vm663 = vcmp.lt.f32.partialorder %v641, %v655
      %vm664 = vcmp.lt.f32.partialorder %v642, %v655
      %vm665 = vcmp.lt.f32.partialorder %v643, %v655
      %vm666 = vcmp.lt.f32.partialorder %v644, %v655
      %vm667 = vcmp.lt.f32.partialorder %v645, %v655
      %vm668 = vcmp.lt.f32.partialorder %v646, %v655
      %vm669 = vcmp.lt.f32.partialorder %v647, %v655
      %vm670 = vcmp.lt.f32.partialorder %v648, %v655
      %vm671 = vcmp.lt.f32.partialorder %v649, %v655
      %v672 = vsel %vm656, 1, 0
      %v673 = vsel %vm657, 1, 0
      %v674 = vsel %vm658, 1, 0
      %v675 = vsel %vm659, 1, 0
      %v676 = vsel %vm660, 1, 0
      %v677 = vsel %vm661, 1, 0
      %v678 = vsel %vm662, 1, 0
      %v679 = vsel %vm663, 1, 0
      %v680 = vsel %vm664, 1, 0
      %v681 = vsel %vm665, 1, 0
      %v682 = vsel %vm666, 1, 0
      %v683 = vsel %vm667, 1, 0
      %v684 = vsel %vm668, 1, 0
      %v685 = vsel %vm669, 1, 0
      %v686 = vsel %vm670, 1, 0
      %v687 = vsel %vm671, 1, 0
      %v688 = vcvt.s32.f32 %v672
      %v689 = vcvt.s32.f32 %v673
      %v690 = vcvt.s32.f32 %v674
      %v691 = vcvt.s32.f32 %v675
      %v692 = vcvt.s32.f32 %v676
      %v693 = vcvt.s32.f32 %v677
      %v694 = vcvt.s32.f32 %v678
      %v695 = vcvt.s32.f32 %v679
      %v696 = vcvt.s32.f32 %v680
      %v697 = vcvt.s32.f32 %v681
      %v698 = vcvt.s32.f32 %v682
      %v699 = vcvt.s32.f32 %v683
      %v700 = vcvt.s32.f32 %v684
      %v701 = vcvt.s32.f32 %v685
      %v702 = vcvt.s32.f32 %v686
      %v703 = vcvt.s32.f32 %v687
      %704 = vxpose.xlu0.b32.start [1/16] %v359, 128
      %705 = vxpose.xlu0.b32.cont [2/16] 0.0, 128
      %706 = vxpose.xlu0.b32.cont [3/16] 0.0, 128
      %707 = vxpose.xlu0.b32.cont [4/16] 0.0, 128
      %708 = vxpose.xlu0.b32.cont [5/16] 0.0, 128
      %709 = vxpose.xlu0.b32.cont [6/16] 0.0, 128
      %710 = vxpose.xlu0.b32.cont [7/16] 0.0, 128
      %711 = vxpose.xlu0.b32.cont [8/16] 0.0, 128
      %712 = vxpose.xlu0.b32.cont [9/16] 0.0, 128
      %713 = vxpose.xlu0.b32.cont [10/16] 0.0, 128
      %714 = vxpose.xlu0.b32.cont [11/16] 0.0, 128
      %715 = vxpose.xlu0.b32.cont [12/16] 0.0, 128
      %716 = vxpose.xlu0.b32.cont [13/16] 0.0, 128
      %717 = vxpose.xlu0.b32.cont [14/16] 0.0, 128
      %718 = vxpose.xlu0.b32.cont [15/16] 0.0, 128
      %719 = vxpose.xlu0.b32.end [16/16] 0.0, 128
      %v720 = vpop.trf.xlu0
      %v721 = vpop.trf.xlu0
      %v722 = vpop.trf.xlu0
      %v723 = vpop.trf.xlu0
      %v724 = vpop.trf.xlu0
      %v725 = vpop.trf.xlu0
      %v726 = vpop.trf.xlu0
      %v727 = vpop.trf.xlu0
      %v728 = vpop.trf.xlu0
      %v729 = vpop.trf.xlu0
      %v730 = vpop.trf.xlu0
      %v731 = vpop.trf.xlu0
      %v732 = vpop.trf.xlu0
      %v733 = vpop.trf.xlu0
      %v734 = vpop.trf.xlu0
      %v735 = vpop.trf.xlu0
      %v736 = vmul.f32 %v359, %v275
      %v737 = vsel %vm276, %v736, 0.0
      %738 = vadd.xlane.f32.xlu0 %v737
      %v739 = vpop.xlane.xlu0 %738
      %v740 = vmul.f32 %v720, %v688
      %v741 = vmul.f32 %v721, %v689
      %v742 = vmul.f32 %v722, %v690
      %v743 = vmul.f32 %v723, %v691
      %v744 = vmul.f32 %v724, %v692
      %v745 = vmul.f32 %v725, %v693
      %v746 = vmul.f32 %v726, %v694
      %v747 = vmul.f32 %v727, %v695
      %v748 = vmul.f32 %v728, %v696
      %v749 = vmul.f32 %v729, %v697
      %v750 = vmul.f32 %v730, %v698
      %v751 = vmul.f32 %v731, %v699
      %v752 = vmul.f32 %v732, %v700
      %v753 = vmul.f32 %v733, %v701
      %v754 = vmul.f32 %v734, %v702
      %v755 = vmul.f32 %v735, %v703
      %vm756 = vcmask 7168
      %v757 = vsel %vm756, %v740, 0.0
      %v758 = vsel %vm756, %v741, 0.0
      %v759 = vadd.f32 %v757, %v758
      %v760 = vsel %vm756, %v742, 0.0
      %v761 = vadd.f32 %v759, %v760
      %v762 = vsel %vm756, %v743, 0.0
      %v763 = vadd.f32 %v761, %v762
      %v764 = vsel %vm756, %v744, 0.0
      %v765 = vadd.f32 %v763, %v764
      %v766 = vsel %vm756, %v745, 0.0
      %v767 = vadd.f32 %v765, %v766
      %v768 = vsel %vm756, %v746, 0.0
      %v769 = vadd.f32 %v767, %v768
      %v770 = vsel %vm756, %v747, 0.0
      %v771 = vadd.f32 %v769, %v770
      %v772 = vsel %vm756, %v748, 0.0
      %v773 = vadd.f32 %v771, %v772
      %v774 = vsel %vm756, %v749, 0.0
      %v775 = vadd.f32 %v773, %v774
      %v776 = vsel %vm756, %v750, 0.0
      %v777 = vadd.f32 %v775, %v776
      %v778 = vsel %vm756, %v751, 0.0
      %v779 = vadd.f32 %v777, %v778
      %v780 = vsel %vm756, %v752, 0.0
      %v781 = vadd.f32 %v779, %v780
      %v782 = vsel %vm756, %v753, 0.0
      %v783 = vadd.f32 %v781, %v782
      %v784 = vsel %vm756, %v754, 0.0
      %v785 = vadd.f32 %v783, %v784
      %v786 = vsel %vm756, %v755, 0.0
      %v787 = vadd.f32 %v785, %v786
      %v788 = vrot.slane %v787, 4
      %v789 = vadd.f32 %v787, %v788
      %v790 = vrot.slane %v789, 2
      %v791 = vadd.f32 %v789, %v790
      %v792 = vrot.slane %v791, 1
      %v793 = vadd.f32 %v791, %v792
      %v794 = vadd.f32 %v739, %v793
      %v795 = vadd.f32 %v326, %v794
      %vm796 = vcmp.gt.f32.partialorder %v279, 0.0
      %v797 = vsel %vm796, 1, 0
      %v798 = vcvt.s32.f32 %v797
      %v799 = vmax.f32 %v279, 1e-06
      %v800 = vmul.f32 %v795, %v798
      %v801 = vrcp.pop %v799
      %v802 = vmul.f32 %v800, %v801
      %vm803 = vcmask 0
      %804 = vst.msk [vmem:[%s265] sm:$0x1] %vm803, %v802
      %p805 = scmp.lt.s32.totalorder %s16, 1
      %s806 = scalar_select %p805, %s16, 1
      %s807 = scalar_lea.vmem %s5, %s806
      // Predicated region
      $region41: #{ssd_loss.1} parent=39 // pred_check
        %p808 = pneg %p159
      $region42: #{ssd_loss.1} parent=39 // pred_check_branch
        %810 = sbr.rel (%p808) target = $region44
      $region43: #{ssd_loss.1} parent=39 // pred_region
        _
      $region44: #{ssd_loss.1} parent=39 // pred_fallthru
        _
    $region40: #{ssd_loss.1} parent=5 // pred_fallthru
      _
    %p811 = scmp.le.s32.totalorder 2, %s11
    // Predicated region
    $region45: #{ssd_loss.1} parent=5 // pred_check
      %p812 = pneg %p811
    $region46: #{ssd_loss.1} parent=5 // pred_check_branch
      %814 = sbr.rel (%p812) target = $region48
    $region47: #{ssd_loss.1} parent=5 // pred_region
      %s815 = ssub.s32 %s11, 2
      // Predicated region
      $region49: #{ssd_loss.1} parent=47 // pred_check
        %p816 = pneg %p165
      $region50: #{ssd_loss.1} parent=47 // pred_check_branch
        %818 = sbr.rel (%p816) target = $region52
      $region51: #{ssd_loss.1} parent=47 // pred_region
        %p819 = scmp.lt.s32.totalorder %s17, 1
        %s820 = scalar_select %p819, %s17, 1
        %s821 = scalar_lea.vmem %s5, %s820
      $region52: #{ssd_loss.1} parent=47 // pred_fallthru
        _
    $region48: #{ssd_loss.1} parent=5 // pred_fallthru
      _
  $region6: #{ssd_loss.1} parent=0 // loop_footer
    %s15 = sadd.s32 1, %s11
  $region7: #{ssd_loss.1} parent=0 // loop_footer_branch
    %10 = sbr.rel target = $region3
  $region8: #{ssd_loss.1} parent=0 // loop_exit
    _

</llo_original>
